<compile_context>
chip_gen: v7x
topology: tpu7x:2x2x1
jax: 0.10.0
libtpu: 0.0.40
codegen_flags: <defaults>
</compile_context>

<pallas_src>
import jax
import jax.numpy as jnp
from jax.experimental import pallas as pl
from jax.experimental.pallas import tpu as pltpu


def _round_up(x, m):
    return ((x + m - 1) // m) * m


# ----------------------------- Pallas kernel --------------------------------
def _fused_mlp_kernel(x_ref, w_ref, b_ref, o_ref, act_ref):
    """One grid step == one Linear layer.

    step 0          : act = relu(x   @ W0 + b0)   (input_layer + ReLU)
    steps 1..L      : act = relu(act @ Wk + bk)   (hidden Linear + ReLU)
    step L+1 (last) : out =      act @ WL + bL    (output_layer, no activation)

    act_ref is persistent VMEM scratch -> activation never touches HBM
    between layers; the output block stays VMEM-resident and is written
    back once at the end of the grid.
    """
    k = pl.program_id(0)
    last = pl.num_programs(0) - 1

    @pl.when(k == 0)
    def _():
        act_ref[...] = x_ref[...]

    acc = jnp.dot(act_ref[...], w_ref[...], preferred_element_type=jnp.float32)
    acc = acc + b_ref[...]  # (1, Dp) bias broadcasts over the batch rows

    @pl.when(k != last)
    def _():
        act_ref[...] = jnp.maximum(acc, 0.0)

    @pl.when(k == last)
    def _():
        o_ref[...] = acc.astype(o_ref.dtype)


# --------------------------- packing + forward -------------------------------
def _pack_layers(params, d_pad):
    """Stack all layer weights/biases zero-padded to a uniform (d_pad, d_pad)."""
    layers = ([params["input_layer"]]
              + list(params["hidden_layers"])
              + [params["output_layer"]])
    n = len(layers)
    w_all = jnp.zeros((n, d_pad, d_pad), jnp.float32)
    b_all = jnp.zeros((n, 1, d_pad), jnp.float32)
    for i, (w, b) in enumerate(layers):
        w_all = w_all.at[i, : w.shape[0], : w.shape[1]].set(w)
        b_all = b_all.at[i, 0, : b.shape[0]].set(b)
    return w_all, b_all


def dnn_forward(params, x):
    """Mirrors DNN.forward: Linear -> ReLU -> (Linear -> ReLU)*N -> Linear."""
    B, d_in = x.shape
    d_hidden = params["input_layer"][0].shape[1]
    d_out = params["output_layer"][0].shape[1]

    # Lane-dense / sublane-aligned padded sizes (shared width for all layers).
    d_pad = max(_round_up(d, 128) for d in (d_in, d_hidden, d_out))
    b_pad = _round_up(B, 8)

    x_p = jnp.pad(x.astype(jnp.float32), ((0, b_pad - B), (0, d_pad - d_in)))
    w_all, b_all = _pack_layers(params, d_pad)
    n_layers = w_all.shape[0]  # = hidden_layer_nb + 2

    out_p = pl.pallas_call(
        _fused_mlp_kernel,
        out_shape=jax.ShapeDtypeStruct((b_pad, d_pad), jnp.float32),
        grid=(n_layers,),
        in_specs=[
            # Input activations: same block every step -> DMA'd once, resident.
            pl.BlockSpec((b_pad, d_pad), lambda k: (0, 0)),
            # Layer-k weight / bias tiles (double-buffered prefetch over k).
            pl.BlockSpec((None, d_pad, d_pad), lambda k: (k, 0, 0)),
            pl.BlockSpec((None, 1, d_pad), lambda k: (k, 0, 0)),
        ],
        # Same output block every step -> stays in VMEM, written back at end.
        out_specs=pl.BlockSpec((b_pad, d_pad), lambda k: (0, 0)),
        scratch_shapes=[pltpu.VMEM((b_pad, d_pad), jnp.float32)],
        compiler_params=pltpu.CompilerParams(
            dimension_semantics=("arbitrary",),  # activation carried across steps
            vmem_limit_bytes=64 * 1024 * 1024,
        ),
    )(x_p, w_all, b_all)

    return out_p[:B, :d_out]


# ------------------------------ init ----------------------------------------
def _init_linear(key, fan_in, fan_out):
    """PyTorch-style init: U(-1/sqrt(fan_in), 1/sqrt(fan_in)); W stored (in, out)."""
    kw, kb = jax.random.split(key)
    bound = 1.0 / jnp.sqrt(jnp.float32(fan_in))
    w = jax.random.uniform(kw, (fan_in, fan_out), jnp.float32, -bound, bound)
    b = jax.random.uniform(kb, (fan_out,), jnp.float32, -bound, bound)
    return w, b


def init_dnn_params(key, input_size, hidden_size, output_size, hidden_layer_nb):
    keys = jax.random.split(key, 2 + hidden_layer_nb)
    return {
        "input_layer": _init_linear(keys[0], input_size, hidden_size),
        "hidden_layers": [
            _init_linear(keys[1 + i], hidden_size, hidden_size)
            for i in range(hidden_layer_nb)
        ],
        "output_layer": _init_linear(keys[1 + hidden_layer_nb],
                                     hidden_size, output_size),
    }


# ------------------------------- main ----------------------------------------
if __name__ == "__main__":
    batch = 8
    input_size = 32
    hidden_size = 32
    output_size = 10
    hidden_layer_nb = 2

    key = jax.random.PRNGKey(0)
    k_params, k_x = jax.random.split(key)

    params = init_dnn_params(k_params, input_size, hidden_size,
                             output_size, hidden_layer_nb)
    x = jax.random.normal(k_x, (batch, input_size), jnp.float32)

    forward = jax.jit(dnn_forward)
    out = jax.block_until_ready(forward(params, x))

    # Pure-JAX reference for semantics.
    def ref_forward(params, x):
        w, b = params["input_layer"]
        x = jnp.maximum(x @ w + b, 0.0)
        for (w, b) in params["hidden_layers"]:
            x = jnp.maximum(x @ w + b, 0.0)
        w, b = params["output_layer"]
        return x @ w + b

    ref = ref_forward(params, x)
    assert out.shape == (batch, output_size)
    assert jnp.allclose(out, ref, atol=1e-5, rtol=1e-5)

    print("KERNEL_OK")
</pallas_src>

<mosaic_0001>
module attributes {stable_mosaic.version = 11 : i64} {
  func.func @_fused_mlp_kernel(%arg0: i32, %arg1: memref<8x128xf32, #tpu.memory_space<vmem>>, %arg2: memref<1x128x128xf32, #tpu.memory_space<vmem>>, %arg3: memref<1x1x128xf32, #tpu.memory_space<vmem>>, %arg4: memref<8x128xf32, #tpu.memory_space<vmem>>, %arg5: memref<8x128xf32, #tpu.memory_space<vmem>>) attributes {dimension_semantics = [#tpu.dimension_semantics<arbitrary>], iteration_bounds = array<i64: 4>, scalar_prefetch = 0 : i64, scratch_operands = 1 : i64, tpu.core_type = #tpu.core_type<tc>, window_params = [{pipeline_mode = #tpu.pipeline_mode<synchronous>, transform_indices = @transform_0, window_bounds = array<i64: 8, 128>}, {transform_indices = @transform_1, window_bounds = array<i64: 1, 128, 128>}, {transform_indices = @transform_2, window_bounds = array<i64: 1, 1, 128>}, {pipeline_mode = #tpu.pipeline_mode<synchronous>, transform_indices = @transform_3, window_bounds = array<i64: 8, 128>}]} {
    %c0_i32 = arith.constant 0 : i32
    %0 = arith.cmpi eq, %arg0, %c0_i32 : i32
    %1 = arith.extui %0 : i1 to i32
    %c0_i32_0 = arith.constant 0 : i32
    %2 = arith.cmpi ne, %1, %c0_i32_0 : i32
    scf.if %2 {
      %c0_11 = arith.constant 0 : index
      %c0_12 = arith.constant 0 : index
      %17 = vector.load %arg1[%c0_11, %c0_12] : memref<8x128xf32, #tpu.memory_space<vmem>>, vector<8x128xf32>
      %c0_13 = arith.constant 0 : index
      %c0_14 = arith.constant 0 : index
      %18 = vector.load %arg5[%c0_13, %c0_14] : memref<8x128xf32, #tpu.memory_space<vmem>>, vector<8x128xf32>
      tpu.vector_store %arg5[%c0_13, %c0_14], %17 {strides = array<i32>} : memref<8x128xf32, #tpu.memory_space<vmem>>, vector<8x128xf32>,
    } else {
    }
    %c0 = arith.constant 0 : index
    %c0_1 = arith.constant 0 : index
    %3 = vector.load %arg5[%c0, %c0_1] : memref<8x128xf32, #tpu.memory_space<vmem>>, vector<8x128xf32>
    %c0_2 = arith.constant 0 : index
    %c0_3 = arith.constant 0 : index
    %c0_4 = arith.constant 0 : index
    %4 = vector.load %arg2[%c0_2, %c0_3, %c0_4] : memref<1x128x128xf32, #tpu.memory_space<vmem>>, vector<1x128x128xf32>
    %5 = vector.shape_cast %4 : vector<1x128x128xf32> to vector<128x128xf32>
    %cst = arith.constant dense<0.000000e+00> : vector<8x128xf32>
    %6 = tpu.matmul %3, %5, %cst {dimension_numbers = #tpu.dot_dimension_numbers<[1], [0], [0], [1], [0, 0, 1, 1], [], []>} : vector<8x128xf32>, vector<128x128xf32>, vector<8x128xf32> -> vector<8x128xf32>
    %c0_5 = arith.constant 0 : index
    %c0_6 = arith.constant 0 : index
    %c0_7 = arith.constant 0 : index
    %7 = vector.load %arg3[%c0_5, %c0_6, %c0_7] : memref<1x1x128xf32, #tpu.memory_space<vmem>>, vector<1x1x128xf32>
    %8 = vector.shape_cast %7 : vector<1x1x128xf32> to vector<1x128xf32>
    %9 = vector.broadcast %8 : vector<1x128xf32> to vector<8x128xf32>
    %10 = arith.addf %6, %9 : vector<8x128xf32>
    %c3_i32 = arith.constant 3 : i32
    %11 = arith.cmpi ne, %arg0, %c3_i32 : i32
    %12 = arith.extui %11 : i1 to i32
    %c0_i32_8 = arith.constant 0 : i32
    %13 = arith.cmpi ne, %12, %c0_i32_8 : i32
    scf.if %13 {
      %cst_11 = arith.constant 0.000000e+00 : f32
      %17 = vector.broadcast %cst_11 : f32 to vector<8x128xf32>
      %18 = arith.maximumf %10, %17 : vector<8x128xf32>
      %c0_12 = arith.constant 0 : index
      %c0_13 = arith.constant 0 : index
      %19 = vector.load %arg5[%c0_12, %c0_13] : memref<8x128xf32, #tpu.memory_space<vmem>>, vector<8x128xf32>
      tpu.vector_store %arg5[%c0_12, %c0_13], %18 {strides = array<i32>} : memref<8x128xf32, #tpu.memory_space<vmem>>, vector<8x128xf32>,
    } else {
    }
    %c3_i32_9 = arith.constant 3 : i32
    %14 = arith.cmpi eq, %arg0, %c3_i32_9 : i32
    %15 = arith.extui %14 : i1 to i32
    %c0_i32_10 = arith.constant 0 : i32
    %16 = arith.cmpi ne, %15, %c0_i32_10 : i32
    scf.if %16 {
      %c0_11 = arith.constant 0 : index
      %c0_12 = arith.constant 0 : index
      %17 = vector.load %arg4[%c0_11, %c0_12] : memref<8x128xf32, #tpu.memory_space<vmem>>, vector<8x128xf32>
      tpu.vector_store %arg4[%c0_11, %c0_12], %10 {strides = array<i32>} : memref<8x128xf32, #tpu.memory_space<vmem>>, vector<8x128xf32>,
    } else {
    }
    return
  }
  func.func @transform_0(%arg0: i32) -> (i32, i32) {
    %c0_i32 = arith.constant 0 : i32
    %c0_i32_0 = arith.constant 0 : i32
    %c0_i32_1 = arith.constant 0 : i32
    return %c0_i32, %c0_i32_0 : i32, i32
  }
  func.func @transform_1(%arg0: i32) -> (i32, i32, i32) {
    %c0_i32 = arith.constant 0 : i32
    %c0_i32_0 = arith.constant 0 : i32
    %c0_i32_1 = arith.constant 0 : i32
    return %arg0, %c0_i32, %c0_i32_0 : i32, i32, i32
  }
  func.func @transform_2(%arg0: i32) -> (i32, i32, i32) {
    %c0_i32 = arith.constant 0 : i32
    %c0_i32_0 = arith.constant 0 : i32
    %c0_i32_1 = arith.constant 0 : i32
    return %arg0, %c0_i32, %c0_i32_0 : i32, i32, i32
  }
  func.func @transform_3(%arg0: i32) -> (i32, i32) {
    %c0_i32 = arith.constant 0 : i32
    %c0_i32_0 = arith.constant 0 : i32
    %c0_i32_1 = arith.constant 0 : i32
    return %c0_i32, %c0_i32_0 : i32, i32
  }
}

</mosaic_0001>

<llo_original>
// kernel: dnn_forward.1
$region0: #{dnn_forward.1}
  #allocation0 [shape = 'u32[]', space=smem, size = 0x4, offset = 0x4, fixed_abs, tag = 'smem constant byte address 0x4 - core index']
  #allocation1 [shape = 'u32[144,128]{1,0:T(1,128)}', space=vmem, size = 0x12000, scoped, tag = 'internal scratch']
  #allocation2 [shape = 'f32[8,128]{1,0:T(8,128)}', space=vmem, size = 0x1000, scoped, tag = 'scratch operand']
  %s0 = inlined_call_operand.hbm [shape: f32[8,128], index: 0, kind: input, shape index: {}]
  %s1 = inlined_call_operand.hbm [shape: f32[4,128,128], index: 1, kind: input, shape index: {}]
  %s2 = inlined_call_operand.hbm [shape: f32[4,1,128], index: 2, kind: input, shape index: {}]
  %s3 = inlined_call_operand.hbm [shape: f32[8,128], index: 3, kind: output, shape index: {}]
  %s4 = sld [smem:[#allocation0]]
  $region69: #{dnn_forward.1} parent=0
    _
  %s6 = ssub.s32 1, %s4
  %s7 = scalar_select 0, %s6, %s4
  $region1: #{dnn_forward.1} parent=0
    #allocation3 [shape = 'u8[4096]{0}', space=vmem, size = 0x1000, scoped, tag = 'input window, operand 0, single buffered']
    #allocation4 [shape = 's32[2]{0}', space=sflag, size = 0x8, scoped, tag = 'scoped memory for dnn_forward.1']
    #allocation5 [shape = 's32[2]{0}', space=sflag, size = 0x8, scoped, tag = 'scoped memory for dnn_forward.1']
    #allocation6 [shape = 'u8[131072]{0}', space=vmem, size = 0x20000, scoped, tag = 'input window, operand 1']
    #allocation7 [shape = 's32[2]{0}', space=sflag, size = 0x8, scoped, tag = 'scoped memory for dnn_forward.1']
    #allocation8 [shape = 'u8[1024]{0}', space=vmem, size = 0x400, scoped, tag = 'input window, operand 2']
    #allocation9 [shape = 'u8[4096]{0}', space=vmem, size = 0x1000, scoped, tag = 'output window, operand 0, single buffered']
    %8 = vsyncpa [#allocation4], 0
    %9 = vsyncpa [#allocation7], 0
    %s10 = scalar_lea.sflag [#allocation7], 1
    %11 = vsyncpa %s10, 0
    %12 = vsyncpa [#allocation5], 0
    loop: start=0, step=1, limit=6
    $region2: #{dnn_forward.1} parent=1 // loop_pre_header
      _
    $region3: #{dnn_forward.1} parent=1 // loop_header
      %s14 = sphi 0, %s18
      %p15 = scmp.ge.s32.totalorder %s14, 6
      %s22 = sphi 0, %s22
      %s24 = sphi 0, %s22
      %s25 = sphi 0, %s24
      %s39 = sphi 0, %s25
      %s45 = sphi 0, %s47
      %s48 = sphi 0, %s45
      %s49 = sphi 0, %s48
      %s65 = sphi 0, %s49
      %s71 = sphi 0, %s73
      %s74 = sphi 0, %s71
      %s75 = sphi 0, %s74
      %s91 = sphi 0, %s75
      %s95 = sphi 0, %s95
      %s97 = sphi 0, %s95
      %s98 = sphi 0, %s97
      %s112 = sphi 0, %s98
    $region4: #{dnn_forward.1} parent=1 // loop_header_branch
      %17 = sbr.rel (%p15) target = $region8
    $region5: #{dnn_forward.1} parent=1 // loop_body
      %s19 = ssub.s32 %s14, 1
      %s20 = ssub.s32 %s14, 2
      %s21 = sadd.s32 %s14, 1
      %s23 = sadd.s32 %s22, 1
      %p26 = scmp.eq.s32.totalorder %s14, 3
      %p27 = scmp.ne.s32.totalorder %s22, %s24
      %p28 = scmp.eq.s32.totalorder %s14, 0
      %p29 = por %p27, %p28
      %p30 = scmp.ne.s32.totalorder %s22, %s24
      %p31 = scmp.eq.s32.totalorder %s19, 3
      %p32 = por %p30, %p31
      %p33 = scmp.ne.s32.totalorder %s24, %s25
      %p34 = scmp.eq.s32.totalorder %s19, 0
      %p35 = por %p33, %p34
      %p36 = scmp.ne.s32.totalorder %s24, %s25
      %p37 = scmp.eq.s32.totalorder %s20, 3
      %p38 = por %p36, %p37
      %p40 = scmp.ne.s32.totalorder %s25, %s39
      %p41 = scmp.eq.s32.totalorder %s20, 0
      %p42 = por %p40, %p41
      %s43 = ssub.s32 %s14, %s21
      %p44 = scmp.eq.s32.totalorder %s43, 0
      %s46 = sadd.s32 %s45, 1
      %s47 = scalar_select %p44, %s45, %s46
      %p50 = pneg %p44
      %p51 = scmp.eq.s32.totalorder %s14, 3
      %p52 = por %p50, %p51
      %p53 = scmp.ne.s32.totalorder %s45, %s48
      %p54 = scmp.eq.s32.totalorder %s14, 0
      %p55 = por %p53, %p54
      %p56 = scmp.ne.s32.totalorder %s45, %s48
      %p57 = scmp.eq.s32.totalorder %s19, 3
      %p58 = por %p56, %p57
      %p59 = scmp.ne.s32.totalorder %s48, %s49
      %p60 = scmp.eq.s32.totalorder %s19, 0
      %p61 = por %p59, %p60
      %p62 = scmp.ne.s32.totalorder %s48, %s49
      %p63 = scmp.eq.s32.totalorder %s20, 3
      %p64 = por %p62, %p63
      %p66 = scmp.ne.s32.totalorder %s49, %s65
      %p67 = scmp.eq.s32.totalorder %s20, 0
      %p68 = por %p66, %p67
      %s69 = ssub.s32 %s14, %s21
      %p70 = scmp.eq.s32.totalorder %s69, 0
      %s72 = sadd.s32 %s71, 1
      %s73 = scalar_select %p70, %s71, %s72
      %p76 = pneg %p70
      %p77 = scmp.eq.s32.totalorder %s14, 3
      %p78 = por %p76, %p77
      %p79 = scmp.ne.s32.totalorder %s71, %s74
      %p80 = scmp.eq.s32.totalorder %s14, 0
      %p81 = por %p79, %p80
      %p82 = scmp.ne.s32.totalorder %s71, %s74
      %p83 = scmp.eq.s32.totalorder %s19, 3
      %p84 = por %p82, %p83
      %p85 = scmp.ne.s32.totalorder %s74, %s75
      %p86 = scmp.eq.s32.totalorder %s19, 0
      %p87 = por %p85, %p86
      %p88 = scmp.ne.s32.totalorder %s74, %s75
      %p89 = scmp.eq.s32.totalorder %s20, 3
      %p90 = por %p88, %p89
      %p92 = scmp.ne.s32.totalorder %s75, %s91
      %p93 = scmp.eq.s32.totalorder %s20, 0
      %p94 = por %p92, %p93
      %s96 = sadd.s32 %s95, 1
      %p99 = scmp.eq.s32.totalorder %s14, 3
      %p100 = scmp.ne.s32.totalorder %s95, %s97
      %p101 = scmp.eq.s32.totalorder %s14, 0
      %p102 = por %p100, %p101
      %p103 = scmp.ne.s32.totalorder %s95, %s97
      %p104 = scmp.eq.s32.totalorder %s19, 3
      %p105 = por %p103, %p104
      %p106 = scmp.ne.s32.totalorder %s97, %s98
      %p107 = scmp.eq.s32.totalorder %s19, 0
      %p108 = por %p106, %p107
      %p109 = scmp.ne.s32.totalorder %s97, %s98
      %p110 = scmp.eq.s32.totalorder %s20, 3
      %p111 = por %p109, %p110
      %p113 = scmp.ne.s32.totalorder %s98, %s112
      %p114 = scmp.eq.s32.totalorder %s20, 0
      %p115 = por %p113, %p114
      %p116 = scmp.le.s32.totalorder 1, %s14
      %p117 = scmp.lt.s32.totalorder %s14, 5
      %p118 = pnand %p116, %p117
      %p119 = pneg %p118
      // Predicated region
      $region9: #{dnn_forward.1} parent=5 // pred_check
        _
      $region10: #{dnn_forward.1} parent=5 // pred_check_branch
        %121 = sbr.rel (%p118) target = $region12
      $region11: #{dnn_forward.1} parent=5 // pred_region
        %s122 = ssub.s32 %s14, 1
        // Predicated region
        $region13: #{dnn_forward.1} parent=11 // pred_check
          %p123 = pneg %p35
        $region14: #{dnn_forward.1} parent=11 // pred_check_branch
          %125 = sbr.rel (%p123) target = $region16
        $region15: #{dnn_forward.1} parent=11 // pred_region
          %s127 = ssub.s32 128, 128
          %128 = vsyncadd [#allocation4], %s127
          %s130 = sshll.u32 [#allocation3], 4
          %s131 = int_to_ptr.vmem [resolvable:$true] %s130
          %133 = dma.hbm_to_vmem [thread:$0]  %s0, 128, %s131, [#allocation4]
        $region16: #{dnn_forward.1} parent=11 // pred_fallthru
          _
      $region12: #{dnn_forward.1} parent=5 // pred_fallthru
        _
      %p134 = scmp.lt.s32.totalorder %s14, 4
      // Predicated region
      $region17: #{dnn_forward.1} parent=5 // pred_check
        %p135 = pneg %p134
      $region18: #{dnn_forward.1} parent=5 // pred_check_branch
        %137 = sbr.rel (%p135) target = $region20
      $region19: #{dnn_forward.1} parent=5 // pred_region
        // Predicated region
        $region21: #{dnn_forward.1} parent=19 // pred_check
          %p138 = pneg %p55
        $region22: #{dnn_forward.1} parent=19 // pred_check_branch
          %140 = sbr.rel (%p138) target = $region24
        $region23: #{dnn_forward.1} parent=19 // pred_region
          %s141 = sand.u32 %s14, 1
          %s142 = scalar_lea.sflag [#allocation7], %s141
          %s143 = sand.u32 %s45, 1
          %s144 = smul.addr %s143, 128
          %s145 = scalar_lea.vmem [#allocation6], %s144
          %s147 = ssub.s32 2048, 2048
          %148 = vsyncadd %s142, %s147
          %s149 = smul.addr %s14, 16
          %s150 = smul.addr %s149, 128
          %s151 = scalar_lea.hbm %s1, %s150
          %s152 = sshll.u32 %s145, 4
          %s153 = int_to_ptr.vmem [resolvable:$true] %s152
          %158 = dma.hbm_to_vmem [thread:$0]  %s151, 2048, %s153, %s142, 128, 128, 8
        $region24: #{dnn_forward.1} parent=19 // pred_fallthru
          _
        // Predicated region
        $region25: #{dnn_forward.1} parent=19 // pred_check
          %p159 = pneg %p81
        $region26: #{dnn_forward.1} parent=19 // pred_check_branch
          %161 = sbr.rel (%p159) target = $region28
        $region27: #{dnn_forward.1} parent=19 // pred_region
          %s162 = sand.u32 %s14, 1
          %s163 = scalar_lea.sflag [#allocation7], %s162
          %s164 = sand.u32 %s71, 1
          %s165 = scalar_lea.vmem [#allocation8], %s164
          %s167 = ssub.s32 16, 16
          %168 = vsyncadd %s163, %s167
          %s169 = smul.addr %s14, 16
          %s170 = scalar_lea.hbm %s2, %s169
          %s172 = sshll.u32 %s165, 4
          %s173 = int_to_ptr.vmem [resolvable:$true] %s172
          %175 = dma.hbm_to_vmem [thread:$0]  %s170, 16, %s173, %s163
        $region28: #{dnn_forward.1} parent=19 // pred_fallthru
          _
      $region20: #{dnn_forward.1} parent=5 // pred_fallthru
        _
      %p176 = scmp.le.s32.totalorder 1, %s14
      %p177 = scmp.lt.s32.totalorder %s14, 5
      %p178 = pnand %p176, %p177
      %p179 = pneg %p178
      // Predicated region
      $region29: #{dnn_forward.1} parent=5 // pred_check
        _
      $region30: #{dnn_forward.1} parent=5 // pred_check_branch
        %181 = sbr.rel (%p178) target = $region32
      $region31: #{dnn_forward.1} parent=5 // pred_region
        %s182 = ssub.s32 %s14, 1
        // Predicated region
        $region33: #{dnn_forward.1} parent=31 // pred_check
          %p183 = pneg %p35
        $region34: #{dnn_forward.1} parent=31 // pred_check_branch
          %185 = sbr.rel (%p183) target = $region36
        $region35: #{dnn_forward.1} parent=31 // pred_region
          %186 = dma.done [#allocation4], 128
        $region36: #{dnn_forward.1} parent=31 // pred_fallthru
          _
        %s187 = sand.u32 %s19, 1
        %s188 = scalar_lea.sflag [#allocation7], %s187
        %s189 = sand.u32 %s48, 1
        %s190 = smul.addr %s189, 128
        %s191 = scalar_lea.vmem [#allocation6], %s190
        // Predicated region
        $region37: #{dnn_forward.1} parent=31 // pred_check
          %p192 = pneg %p61
        $region38: #{dnn_forward.1} parent=31 // pred_check_branch
          %194 = sbr.rel (%p192) target = $region40
        $region39: #{dnn_forward.1} parent=31 // pred_region
          %195 = dma.done %s188, 2048
        $region40: #{dnn_forward.1} parent=31 // pred_fallthru
          _
        %s196 = sand.u32 %s19, 1
        %s197 = scalar_lea.sflag [#allocation7], %s196
        %s198 = sand.u32 %s74, 1
        %s199 = scalar_lea.vmem [#allocation8], %s198
        // Predicated region
        $region41: #{dnn_forward.1} parent=31 // pred_check
          %p200 = pneg %p87
        $region42: #{dnn_forward.1} parent=31 // pred_check_branch
          %202 = sbr.rel (%p200) target = $region44
        $region43: #{dnn_forward.1} parent=31 // pred_region
          %203 = dma.done %s197, 16
        $region44: #{dnn_forward.1} parent=31 // pred_fallthru
          _
        %p204 = pneg %p35
        %p205 = pneg %p32
        %s206 = sand.u32 %s19, 1
        %s207 = scalar_lea.sflag [#allocation7], %s206
        %s208 = sand.u32 %s48, 1
        %s209 = smul.addr %s208, 128
        %s210 = scalar_lea.vmem [#allocation6], %s209
        %p211 = pneg %p61
        %p212 = pneg %p58
        %s213 = sand.u32 %s19, 1
        %s214 = scalar_lea.sflag [#allocation7], %s213
        %s215 = sand.u32 %s74, 1
        %s216 = scalar_lea.vmem [#allocation8], %s215
        %p217 = pneg %p87
        %p218 = pneg %p84
        %p219 = pneg %p108
        %p220 = pneg %p105
        %p221 = scmp.eq.s32.totalorder %s19, 0
        // Predicated region
        $region45: #{dnn_forward.1} parent=31 // pred_check
          %p222 = pneg %p221
        $region46: #{dnn_forward.1} parent=31 // pred_check_branch
          %224 = sbr.rel (%p222) target = $region48
        $region47: #{dnn_forward.1} parent=31 // pred_region
          %v225 = vld [vmem:[#allocation3] sm:$0xff]
          %226 = vst [vmem:[#allocation2] sm:$0xff] %v225
        $region48: #{dnn_forward.1} parent=31 // pred_fallthru
          _
        %v227 = vld [vmem:[#allocation2] sm:$0xff]
        %v228 = vld [vmem:[%s191] sm:$0xff]
        %v229 = vld [vmem:[%s191 + $0x8] sm:$0xff]
        %v230 = vld [vmem:[%s191 + $0x10] sm:$0xff]
        %v231 = vld [vmem:[%s191 + $0x18] sm:$0xff]
        %v232 = vld [vmem:[%s191 + $0x20] sm:$0xff]
        %v233 = vld [vmem:[%s191 + $0x28] sm:$0xff]
        %v234 = vld [vmem:[%s191 + $0x30] sm:$0xff]
        %v235 = vld [vmem:[%s191 + $0x38] sm:$0xff]
        %v236 = vld [vmem:[%s191 + $0x40] sm:$0xff]
        %v237 = vld [vmem:[%s191 + $0x48] sm:$0xff]
        %v238 = vld [vmem:[%s191 + $0x50] sm:$0xff]
        %v239 = vld [vmem:[%s191 + $0x58] sm:$0xff]
        %v240 = vld [vmem:[%s191 + $0x60] sm:$0xff]
        %v241 = vld [vmem:[%s191 + $0x68] sm:$0xff]
        %v242 = vld [vmem:[%s191 + $0x70] sm:$0xff]
        %v243 = vld [vmem:[%s191 + $0x78] sm:$0xff]
        %v244 = vld [vmem:[%s199] sm:$0x1]
        %v246 = vlaneseq
        %v247 = vshrl.u32 %v246, 7
        %v248 = vsub.s32 0, %v247
        %v249 = vrot.slane %v244, %v248
        %251 = vmatprep.subr.mxu0 0.0
        %252 = vmatpush1.msra.mxu0 %v228
        %253 = vmatprep.subr.mxu0 0.0
        %254 = vmatpush1.msra.mxu0 %v229
        %255 = vmatprep.subr.mxu0 0.0
        %256 = vmatpush1.msra.mxu0 %v230
        %257 = vmatprep.subr.mxu0 0.0
        %258 = vmatpush1.msra.mxu0 %v231
        %259 = vmatprep.subr.mxu0 0.0
        %260 = vmatpush1.msra.mxu0 %v232
        %261 = vmatprep.subr.mxu0 0.0
        %262 = vmatpush1.msra.mxu0 %v233
        %263 = vmatprep.subr.mxu0 0.0
        %264 = vmatpush1.msra.mxu0 %v234
        %265 = vmatprep.subr.mxu0 0.0
        %266 = vmatpush1.msra.mxu0 %v235
        %267 = vmatprep.subr.mxu0 0.0
        %268 = vmatpush1.msra.mxu0 %v236
        %269 = vmatprep.subr.mxu0 0.0
        %270 = vmatpush1.msra.mxu0 %v237
        %271 = vmatprep.subr.mxu0 0.0
        %272 = vmatpush1.msra.mxu0 %v238
        %273 = vmatprep.subr.mxu0 0.0
        %274 = vmatpush1.msra.mxu0 %v239
        %275 = vmatprep.subr.mxu0 0.0
        %276 = vmatpush1.msra.mxu0 %v240
        %277 = vmatprep.subr.mxu0 0.0
        %278 = vmatpush1.msra.mxu0 %v241
        %279 = vmatprep.subr.mxu0 0.0
        %280 = vmatpush1.msra.mxu0 %v242
        %281 = vmatprep.subr.mxu0 0.0
        %282 = vmatpush1.msra.mxu0 %v243
        %283 = vmatprep.subr.mxu0 0.0
        %284 = vmatpush1.msra.mxu0 0.0
        %285 = vmatprep.subr.mxu0 0.0
        %286 = vmatpush1.msra.mxu0 0.0
        %287 = vmatprep.subr.mxu0 0.0
        %288 = vmatpush1.msra.mxu0 0.0
        %289 = vmatprep.subr.mxu0 0.0
        %290 = vmatpush1.msra.mxu0 0.0
        %291 = vmatprep.subr.mxu0 0.0
        %292 = vmatpush1.msra.mxu0 0.0
        %293 = vmatprep.subr.mxu0 0.0
        %294 = vmatpush1.msra.mxu0 0.0
        %295 = vmatprep.subr.mxu0 0.0
        %296 = vmatpush1.msra.mxu0 0.0
        %297 = vmatprep.subr.mxu0 0.0
        %298 = vmatpush1.msra.mxu0 0.0
        %299 = vmatprep.subr.mxu0 0.0
        %300 = vmatpush1.msra.mxu0 0.0
        %301 = vmatprep.subr.mxu0 0.0
        %302 = vmatpush1.msra.mxu0 0.0
        %303 = vmatprep.subr.mxu0 0.0
        %304 = vmatpush1.msra.mxu0 0.0
        %305 = vmatprep.subr.mxu0 0.0
        %306 = vmatpush1.msra.mxu0 0.0
        %307 = vmatprep.subr.mxu0 0.0
        %308 = vmatpush1.msra.mxu0 0.0
        %309 = vmatprep.subr.mxu0 0.0
        %310 = vmatpush1.msra.mxu0 0.0
        %311 = vmatprep.subr.mxu0 0.0
        %312 = vmatpush1.msra.mxu0 0.0
        %313 = vmatprep.subr.mxu0 0.0
        %314 = vmatpush1.msra.mxu0 0.0
        %315 = vmatprep.mubr.f32.mxu0 0.0
        %316 = vmatmul.mubr.f32.gmra.mrb[0].mxu0 %v227
        %v317 = vpop.f32.mrb[0].mxu0
        %v318 = vadd.f32 %v249, %v317
        %v319 = vpop.f32.mrb[0].mxu0
        %320 = vdwg.mxu0
        %p321 = scmp.ne.s32.totalorder %s19, 3
        // Predicated region
        $region49: #{dnn_forward.1} parent=31 // pred_check
          %p322 = pneg %p321
        $region50: #{dnn_forward.1} parent=31 // pred_check_branch
          %324 = sbr.rel (%p322) target = $region52
        $region51: #{dnn_forward.1} parent=31 // pred_region
          %v325 = vmax.f32 %v318, 0.0
          %326 = vst [vmem:[#allocation2] sm:$0xff] %v325
        $region52: #{dnn_forward.1} parent=31 // pred_fallthru
          _
        %p327 = scmp.eq.s32.totalorder %s19, 3
        // Predicated region
        $region53: #{dnn_forward.1} parent=31 // pred_check
          %p328 = pneg %p327
        $region54: #{dnn_forward.1} parent=31 // pred_check_branch
          %330 = sbr.rel (%p328) target = $region56
        $region55: #{dnn_forward.1} parent=31 // pred_region
          %331 = vst [vmem:[#allocation9] sm:$0xff] %v318
        $region56: #{dnn_forward.1} parent=31 // pred_fallthru
          _
        // Predicated region
        $region57: #{dnn_forward.1} parent=31 // pred_check
          %p332 = pneg %p105
        $region58: #{dnn_forward.1} parent=31 // pred_check_branch
          %334 = sbr.rel (%p332) target = $region60
        $region59: #{dnn_forward.1} parent=31 // pred_region
          %s336 = ssub.s32 128, 128
          %337 = vsyncadd [#allocation5], %s336
          %s339 = sshll.u32 [#allocation9], 4
          %s340 = int_to_ptr.vmem [resolvable:$true] %s339
          %342 = dma.vmem_to_hbm [thread:$0]  %s340, 128, %s3, [#allocation5]
        $region60: #{dnn_forward.1} parent=31 // pred_fallthru
          _
        // Predicated region
        $region61: #{dnn_forward.1} parent=31 // pred_check
          %p343 = pneg %p105
        $region62: #{dnn_forward.1} parent=31 // pred_check_branch
          %345 = sbr.rel (%p343) target = $region64
        $region63: #{dnn_forward.1} parent=31 // pred_region
          %346 = dma.done [#allocation5], 128
        $region64: #{dnn_forward.1} parent=31 // pred_fallthru
          _
      $region32: #{dnn_forward.1} parent=5 // pred_fallthru
        _
      %p347 = scmp.le.s32.totalorder 2, %s14
      // Predicated region
      $region65: #{dnn_forward.1} parent=5 // pred_check
        %p348 = pneg %p347
      $region66: #{dnn_forward.1} parent=5 // pred_check_branch
        %350 = sbr.rel (%p348) target = $region68
      $region67: #{dnn_forward.1} parent=5 // pred_region
        %s351 = ssub.s32 %s14, 2
      $region68: #{dnn_forward.1} parent=5 // pred_fallthru
        _
    $region6: #{dnn_forward.1} parent=1 // loop_footer
      %s18 = sadd.s32 1, %s14
    $region7: #{dnn_forward.1} parent=1 // loop_footer_branch
      %13 = sbr.rel target = $region3
    $region8: #{dnn_forward.1} parent=1 // loop_exit
      _
    %352 = vsyncpa [#allocation4], 1
    %s353 = scalar_lea.sflag [#allocation4], 1
    %354 = vsyncpa %s353, 1
    %355 = vsyncpa [#allocation7], 1
    %s356 = scalar_lea.sflag [#allocation7], 1
    %357 = vsyncpa %s356, 1
    %358 = vsyncpa [#allocation5], 1
    %s359 = scalar_lea.sflag [#allocation5], 1
    %360 = vsyncpa %s359, 1

</llo_original>
